<compile_context>
chip_gen: v7x
topology: tpu7x:2x2x1
jax: 0.10.0
libtpu: 0.0.40
codegen_flags: <defaults>
</compile_context>

<pallas_src>
import warnings

import jax
import jax.numpy as jnp
from jax.experimental import pallas as pl
from jax.experimental.pallas import tpu as pltpu


def spinx_kernel(x_ref, w_ref, b_ref, o_ref):
    # x arrives as f32; cast to the (VMEM-resident) weight's dtype here so the
    # wrapper never runs a standalone cast pass over x in HBM.
    x = x_ref[...].astype(w_ref.dtype)
    acc = jnp.dot(x, w_ref[...], preferred_element_type=jnp.float32)
    o_ref[...] = (acc + b_ref[...]).astype(o_ref.dtype)


def select_lane_groups(n, neigs):
    """g rows are packed per output row so stores are full 128-lane wide."""
    if neigs <= 128 and 128 % neigs == 0 and n % (128 // neigs) == 0:
        return 128 // neigs
    warnings.warn(
        "SpINx Pallas kernel: lane_groups=1 fallback (output lane width = "
        f"neigs = {neigs} < 128). Stores become masked vst.msk and are ~4x "
        "slower; pick neigs dividing 128 and a batch divisible by 128//neigs.")
    return 1


def spinx_fold_params(w, b, chol, *, lane_groups, compute_dtype=jnp.bfloat16):
    """Fold chol^{-T} into the linear layer and build the lane-packed
    block-diagonal weight.  Call ONCE per (w, b, chol) update; only the
    pallas_call runs per forward step."""
    d, neigs = w.shape
    g = lane_groups
    eye = jnp.eye(neigs, dtype=jnp.float32)
    l_inv = jax.scipy.linalg.solve_triangular(
        chol.astype(jnp.float32), eye, lower=True)              # L^{-1}
    w_f = w.astype(jnp.float32) @ l_inv.T                       # (d, neigs)
    b_f = b.astype(jnp.float32).reshape(1, neigs) @ l_inv.T     # (1, neigs)
    # NOTE: w_big is VMEM-resident (no streaming cost); pass
    # compute_dtype=jnp.float32 if chol conditioning makes bf16 weights lossy.
    w_big = jnp.kron(jnp.eye(g, dtype=jnp.float32), w_f).astype(compute_dtype)
    b_big = jnp.tile(b_f, (1, g))                                # (1, g*neigs) f32
    return w_big, b_big


def spinx_apply(x, w_big, b_big, neigs, *, tg=2048, out_dtype=jnp.float32):
    """out = (x @ W + b) @ chol^{-T}, with the solve pre-folded into w_big/b_big."""
    n, d = x.shape
    gd, gneigs = w_big.shape
    g = gneigs // neigs
    assert gd == g * d and gneigs == g * neigs
    assert n % g == 0, "batch must be divisible by the lane-group factor"
    n_packed = n // g

    # Lane-dense packing: free row-major view, no data movement, no cast.
    x_packed = x.reshape(n_packed, g * d)

    # Row tile: big enough to amortize the ~0.35us/step overhead, 16-aligned
    # (bf16 sublane packing), padded final tile for ragged sizes.
    tg = min(tg, n_packed)
    if tg < n_packed:
        tg = max(16, (tg // 16) * 16)
    n_pad = pl.cdiv(n_packed, tg) * tg
    if n_pad != n_packed:
        x_packed = jnp.pad(x_packed, ((0, n_pad - n_packed), (0, 0)))

    out_packed = pl.pallas_call(
        spinx_kernel,
        out_shape=jax.ShapeDtypeStruct((n_pad, g * neigs), out_dtype),
        grid_spec=pltpu.PrefetchScalarGridSpec(
            num_scalar_prefetch=0,
            grid=(n_pad // tg,),
            in_specs=[
                pl.BlockSpec((tg, g * d), lambda i: (i, 0)),          # x (streams)
                pl.BlockSpec((g * d, g * neigs), lambda i: (0, 0)),   # W (resident)
                pl.BlockSpec((1, g * neigs), lambda i: (0, 0)),       # b (resident)
            ],
            out_specs=pl.BlockSpec((tg, g * neigs), lambda i: (i, 0)),
        ),
        compiler_params=pltpu.CompilerParams(
            # Shards the 1-D row stream across v7x's two TensorCores;
            # measured neutral on v5e/v6e.
            dimension_semantics=("parallel",),
            # tg=2048 needs ~10.5 MiB double-buffered; raise above v5e's
            # 16 MiB scoped default while staying inside v7x's 64 MiB physical.
            vmem_limit_bytes=32 * 1024 * 1024,
        ),
    )(x_packed, w_big, b_big)

    if n_pad != n_packed:
        out_packed = out_packed[:n_packed]
    return out_packed.reshape(n, neigs)


def spinx_forward(x, w, b, chol, *, tg=2048, out_dtype=jnp.float32,
                  compute_dtype=jnp.bfloat16):
    """Convenience single-shot wrapper (fold + kernel).  For repeated calls with
    fixed (w, b, chol), call spinx_fold_params once and spinx_apply per step."""
    g = select_lane_groups(x.shape[0], w.shape[1])
    w_big, b_big = spinx_fold_params(
        w, b, chol, lane_groups=g, compute_dtype=compute_dtype)
    return spinx_apply(x, w_big, b_big, w.shape[1], tg=tg, out_dtype=out_dtype)


if __name__ == "__main__":
    NEIGS = 8
    N, D = 2048, 32
    key = jax.random.PRNGKey(0)
    kx, kw, kb, kc = jax.random.split(key, 4)

    x = jax.random.normal(kx, (N, D), jnp.float32)
    w = jax.random.normal(kw, (D, NEIGS), jnp.float32) * 0.1
    b = jax.random.normal(kb, (1, NEIGS), jnp.float32) * 0.1

    # Deterministic, well-conditioned lower-triangular chol parameter.
    a = jax.random.normal(kc, (NEIGS, NEIGS), jnp.float32)
    sigma = a @ a.T / NEIGS + jnp.eye(NEIGS)
    chol = jnp.linalg.cholesky(sigma)

    # Hoisted fold (once per parameter update); only the pallas_call runs per step.
    g = select_lane_groups(N, NEIGS)
    w_big, b_big = spinx_fold_params(w, b, chol, lane_groups=g)
    forward = jax.jit(lambda xx: spinx_apply(xx, w_big, b_big, NEIGS, tg=2048))

    out = jax.block_until_ready(forward(x))
    assert out.shape == (N, NEIGS)

    # Loose check vs. the pure-f32 reference of the PyTorch forward.
    phi = x @ w + b
    ref = jax.scipy.linalg.solve_triangular(chol, phi.T, lower=True).T
    assert jnp.allclose(out, ref, atol=5e-2, rtol=5e-2), float(
        jnp.max(jnp.abs(out - ref)))

    # Tight check vs. a reference emulating the kernel's bf16-in / f32-acc math.
    l_inv = jax.scipy.linalg.solve_triangular(chol, jnp.eye(NEIGS), lower=True)
    w_f_bf = (w @ l_inv.T).astype(jnp.bfloat16).astype(jnp.float32)
    b_f = b @ l_inv.T
    ref_bf = x.astype(jnp.bfloat16).astype(jnp.float32) @ w_f_bf + b_f
    assert jnp.allclose(out, ref_bf, atol=1e-3, rtol=1e-3), float(
        jnp.max(jnp.abs(out - ref_bf)))

    print("KERNEL_OK")
</pallas_src>

<mosaic_0001>
module attributes {stable_mosaic.version = 11 : i64} {
  func.func @spinx_kernel(%arg0: i32, %arg1: memref<128x512xf32, #tpu.memory_space<vmem>>, %arg2: memref<512x128xbf16, #tpu.memory_space<vmem>>, %arg3: memref<1x128xf32, #tpu.memory_space<vmem>>, %arg4: memref<128x128xf32, #tpu.memory_space<vmem>>) attributes {dimension_semantics = [#tpu.dimension_semantics<parallel>], iteration_bounds = array<i64: 1>, scalar_prefetch = 0 : i64, scratch_operands = 0 : i64, tpu.core_type = #tpu.core_type<tc>, window_params = [{transform_indices = @transform_0, window_bounds = array<i64: 128, 512>}, {pipeline_mode = #tpu.pipeline_mode<synchronous>, transform_indices = @transform_1, window_bounds = array<i64: 512, 128>}, {pipeline_mode = #tpu.pipeline_mode<synchronous>, transform_indices = @transform_2, window_bounds = array<i64: 1, 128>}, {transform_indices = @transform_3, window_bounds = array<i64: 128, 128>}]} {
    %c0 = arith.constant 0 : index
    %c0_0 = arith.constant 0 : index
    %0 = vector.load %arg1[%c0, %c0_0] : memref<128x512xf32, #tpu.memory_space<vmem>>, vector<128x512xf32>
    %1 = arith.truncf %0 : vector<128x512xf32> to vector<128x512xbf16>
    %c0_1 = arith.constant 0 : index
    %c0_2 = arith.constant 0 : index
    %2 = vector.load %arg2[%c0_1, %c0_2] : memref<512x128xbf16, #tpu.memory_space<vmem>>, vector<512x128xbf16>
    %cst = arith.constant dense<0.000000e+00> : vector<128x128xf32>
    %3 = tpu.matmul %1, %2, %cst {dimension_numbers = #tpu.dot_dimension_numbers<[1], [0], [0], [1], [0, 0, 1, 1], [], []>} : vector<128x512xbf16>, vector<512x128xbf16>, vector<128x128xf32> -> vector<128x128xf32>
    %c0_3 = arith.constant 0 : index
    %c0_4 = arith.constant 0 : index
    %4 = vector.load %arg3[%c0_3, %c0_4] : memref<1x128xf32, #tpu.memory_space<vmem>>, vector<1x128xf32>
    %5 = vector.broadcast %4 : vector<1x128xf32> to vector<128x128xf32>
    %6 = arith.addf %3, %5 : vector<128x128xf32>
    %c0_5 = arith.constant 0 : index
    %c0_6 = arith.constant 0 : index
    %7 = vector.load %arg4[%c0_5, %c0_6] : memref<128x128xf32, #tpu.memory_space<vmem>>, vector<128x128xf32>
    tpu.vector_store %arg4[%c0_5, %c0_6], %6 {strides = array<i32>} : memref<128x128xf32, #tpu.memory_space<vmem>>, vector<128x128xf32>,
    return
  }
  func.func @transform_0(%arg0: i32) -> (i32, i32) {
    %c0_i32 = arith.constant 0 : i32
    %c0_i32_0 = arith.constant 0 : i32
    return %arg0, %c0_i32 : i32, i32
  }
  func.func @transform_1(%arg0: i32) -> (i32, i32) {
    %c0_i32 = arith.constant 0 : i32
    %c0_i32_0 = arith.constant 0 : i32
    %c0_i32_1 = arith.constant 0 : i32
    return %c0_i32, %c0_i32_0 : i32, i32
  }
  func.func @transform_2(%arg0: i32) -> (i32, i32) {
    %c0_i32 = arith.constant 0 : i32
    %c0_i32_0 = arith.constant 0 : i32
    %c0_i32_1 = arith.constant 0 : i32
    return %c0_i32, %c0_i32_0 : i32, i32
  }
  func.func @transform_3(%arg0: i32) -> (i32, i32) {
    %c0_i32 = arith.constant 0 : i32
    %c0_i32_0 = arith.constant 0 : i32
    return %arg0, %c0_i32 : i32, i32
  }
}

</mosaic_0001>

<llo_original>
// kernel: _lambda_.1
$region0: #{_lambda_.1}
  #allocation0 [shape = 'u32[]', space=smem, size = 0x4, offset = 0x4, fixed_abs, tag = 'smem constant byte address 0x4 - core index']
  #allocation1 [shape = 'u32[144,128]{1,0:T(1,128)}', space=vmem, size = 0x12000, scoped, tag = 'internal scratch']
  %s0 = inlined_call_operand.vmem [shape: f32[128,512], index: 0, kind: input, shape index: {}]
  %s1 = inlined_call_operand.vmem [shape: bf16[512,128], index: 1, kind: input, shape index: {}]
  %s2 = inlined_call_operand.vmem [shape: f32[1,128], index: 2, kind: input, shape index: {}]
  %s3 = inlined_call_operand.vmem [shape: f32[128,128], index: 3, kind: output, shape index: {}]
  %s4 = sld [smem:[#allocation0]]
  $region22: #{_lambda_.1} parent=0
    _
  %s6 = ssub.s32 1, %s4
  %s7 = scalar_select 0, %s6, %s4
  // Predicated region
  $region2: #{_lambda_.1} parent=0 // pred_check
    _
  $region3: #{_lambda_.1} parent=0 // pred_check_branch
    %9 = sbr.rel (0) target = $region5
  $region4: #{_lambda_.1} parent=0 // pred_region
    _
  $region5: #{_lambda_.1} parent=0 // pred_fallthru
    _
  // Predicated region
  $region6: #{_lambda_.1} parent=0 // pred_check
    _
  $region7: #{_lambda_.1} parent=0 // pred_check_branch
    %11 = sbr.rel (0) target = $region9
  $region8: #{_lambda_.1} parent=0 // pred_region
    _
  $region9: #{_lambda_.1} parent=0 // pred_fallthru
    _
  // Predicated region
  $region10: #{_lambda_.1} parent=0 // pred_check
    _
  $region11: #{_lambda_.1} parent=0 // pred_check_branch
    %13 = sbr.rel (0) target = $region13
  $region12: #{_lambda_.1} parent=0 // pred_region
    _
  $region13: #{_lambda_.1} parent=0 // pred_fallthru
    _
  %v15 = vld [vmem:[%s0] sm:$0xff]
  %v16 = vld [vmem:[%s0 + $0x8] sm:$0xff]
  %v17 = vld [vmem:[%s0 + $0x10] sm:$0xff]
  %v18 = vld [vmem:[%s0 + $0x18] sm:$0xff]
  %v19 = vld [vmem:[%s0 + $0x20] sm:$0xff]
  %v20 = vld [vmem:[%s0 + $0x28] sm:$0xff]
  %v21 = vld [vmem:[%s0 + $0x30] sm:$0xff]
  %v22 = vld [vmem:[%s0 + $0x38] sm:$0xff]
  %v23 = vld [vmem:[%s0 + $0x40] sm:$0xff]
  %v24 = vld [vmem:[%s0 + $0x48] sm:$0xff]
  %v25 = vld [vmem:[%s0 + $0x50] sm:$0xff]
  %v26 = vld [vmem:[%s0 + $0x58] sm:$0xff]
  %v27 = vld [vmem:[%s0 + $0x60] sm:$0xff]
  %v28 = vld [vmem:[%s0 + $0x68] sm:$0xff]
  %v29 = vld [vmem:[%s0 + $0x70] sm:$0xff]
  %v30 = vld [vmem:[%s0 + $0x78] sm:$0xff]
  %v31 = vld [vmem:[%s0 + $0x80] sm:$0xff]
  %v32 = vld [vmem:[%s0 + $0x88] sm:$0xff]
  %v33 = vld [vmem:[%s0 + $0x90] sm:$0xff]
  %v34 = vld [vmem:[%s0 + $0x98] sm:$0xff]
  %v35 = vld [vmem:[%s0 + $0xa0] sm:$0xff]
  %v36 = vld [vmem:[%s0 + $0xa8] sm:$0xff]
  %v37 = vld [vmem:[%s0 + $0xb0] sm:$0xff]
  %v38 = vld [vmem:[%s0 + $0xb8] sm:$0xff]
  %v39 = vld [vmem:[%s0 + $0xc0] sm:$0xff]
  %v40 = vld [vmem:[%s0 + $0xc8] sm:$0xff]
  %v41 = vld [vmem:[%s0 + $0xd0] sm:$0xff]
  %v42 = vld [vmem:[%s0 + $0xd8] sm:$0xff]
  %v43 = vld [vmem:[%s0 + $0xe0] sm:$0xff]
  %v44 = vld [vmem:[%s0 + $0xe8] sm:$0xff]
  %v45 = vld [vmem:[%s0 + $0xf0] sm:$0xff]
  %v46 = vld [vmem:[%s0 + $0xf8] sm:$0xff]
  %v47 = vld [vmem:[%s0 + $0x100] sm:$0xff]
  %v48 = vld [vmem:[%s0 + $0x108] sm:$0xff]
  %v49 = vld [vmem:[%s0 + $0x110] sm:$0xff]
  %v50 = vld [vmem:[%s0 + $0x118] sm:$0xff]
  %v51 = vld [vmem:[%s0 + $0x120] sm:$0xff]
  %v52 = vld [vmem:[%s0 + $0x128] sm:$0xff]
  %v53 = vld [vmem:[%s0 + $0x130] sm:$0xff]
  %v54 = vld [vmem:[%s0 + $0x138] sm:$0xff]
  %v55 = vld [vmem:[%s0 + $0x140] sm:$0xff]
  %v56 = vld [vmem:[%s0 + $0x148] sm:$0xff]
  %v57 = vld [vmem:[%s0 + $0x150] sm:$0xff]
  %v58 = vld [vmem:[%s0 + $0x158] sm:$0xff]
  %v59 = vld [vmem:[%s0 + $0x160] sm:$0xff]
  %v60 = vld [vmem:[%s0 + $0x168] sm:$0xff]
  %v61 = vld [vmem:[%s0 + $0x170] sm:$0xff]
  %v62 = vld [vmem:[%s0 + $0x178] sm:$0xff]
  %v63 = vld [vmem:[%s0 + $0x180] sm:$0xff]
  %v64 = vld [vmem:[%s0 + $0x188] sm:$0xff]
  %v65 = vld [vmem:[%s0 + $0x190] sm:$0xff]
  %v66 = vld [vmem:[%s0 + $0x198] sm:$0xff]
  %v67 = vld [vmem:[%s0 + $0x1a0] sm:$0xff]
  %v68 = vld [vmem:[%s0 + $0x1a8] sm:$0xff]
  %v69 = vld [vmem:[%s0 + $0x1b0] sm:$0xff]
  %v70 = vld [vmem:[%s0 + $0x1b8] sm:$0xff]
  %v71 = vld [vmem:[%s0 + $0x1c0] sm:$0xff]
  %v72 = vld [vmem:[%s0 + $0x1c8] sm:$0xff]
  %v73 = vld [vmem:[%s0 + $0x1d0] sm:$0xff]
  %v74 = vld [vmem:[%s0 + $0x1d8] sm:$0xff]
  %v75 = vld [vmem:[%s0 + $0x1e0] sm:$0xff]
  %v76 = vld [vmem:[%s0 + $0x1e8] sm:$0xff]
  %v77 = vld [vmem:[%s0 + $0x1f0] sm:$0xff]
  %v78 = vld [vmem:[%s0 + $0x1f8] sm:$0xff]
  %v79 = vpack.c.bf16 %v19, %v15
  %v80 = vpack.c.bf16 %v20, %v16
  %v81 = vpack.c.bf16 %v21, %v17
  %v82 = vpack.c.bf16 %v22, %v18
  %v83 = vpack.c.bf16 %v27, %v23
  %v84 = vpack.c.bf16 %v28, %v24
  %v85 = vpack.c.bf16 %v29, %v25
  %v86 = vpack.c.bf16 %v30, %v26
  %v87 = vpack.c.bf16 %v35, %v31
  %v88 = vpack.c.bf16 %v36, %v32
  %v89 = vpack.c.bf16 %v37, %v33
  %v90 = vpack.c.bf16 %v38, %v34
  %v91 = vpack.c.bf16 %v43, %v39
  %v92 = vpack.c.bf16 %v44, %v40
  %v93 = vpack.c.bf16 %v45, %v41
  %v94 = vpack.c.bf16 %v46, %v42
  %v95 = vpack.c.bf16 %v51, %v47
  %v96 = vpack.c.bf16 %v52, %v48
  %v97 = vpack.c.bf16 %v53, %v49
  %v98 = vpack.c.bf16 %v54, %v50
  %v99 = vpack.c.bf16 %v59, %v55
  %v100 = vpack.c.bf16 %v60, %v56
  %v101 = vpack.c.bf16 %v61, %v57
  %v102 = vpack.c.bf16 %v62, %v58
  %v103 = vpack.c.bf16 %v67, %v63
  %v104 = vpack.c.bf16 %v68, %v64
  %v105 = vpack.c.bf16 %v69, %v65
  %v106 = vpack.c.bf16 %v70, %v66
  %v107 = vpack.c.bf16 %v75, %v71
  %v108 = vpack.c.bf16 %v76, %v72
  %v109 = vpack.c.bf16 %v77, %v73
  %v110 = vpack.c.bf16 %v78, %v74
  %v111 = vld [vmem:[%s1] sm:$0xf]
  %v112 = vld [vmem:[%s1 + $0x4] sm:$0xf]
  %v113 = vld [vmem:[%s1 + $0x8] sm:$0xf]
  %v114 = vld [vmem:[%s1 + $0xc] sm:$0xf]
  %v115 = vld [vmem:[%s1 + $0x10] sm:$0xf]
  %v116 = vld [vmem:[%s1 + $0x14] sm:$0xf]
  %v117 = vld [vmem:[%s1 + $0x18] sm:$0xf]
  %v118 = vld [vmem:[%s1 + $0x1c] sm:$0xf]
  %v119 = vld [vmem:[%s1 + $0x20] sm:$0xf]
  %v120 = vld [vmem:[%s1 + $0x24] sm:$0xf]
  %v121 = vld [vmem:[%s1 + $0x28] sm:$0xf]
  %v122 = vld [vmem:[%s1 + $0x2c] sm:$0xf]
  %v123 = vld [vmem:[%s1 + $0x30] sm:$0xf]
  %v124 = vld [vmem:[%s1 + $0x34] sm:$0xf]
  %v125 = vld [vmem:[%s1 + $0x38] sm:$0xf]
  %v126 = vld [vmem:[%s1 + $0x3c] sm:$0xf]
  %v127 = vld [vmem:[%s1 + $0x40] sm:$0xf]
  %v128 = vld [vmem:[%s1 + $0x44] sm:$0xf]
  %v129 = vld [vmem:[%s1 + $0x48] sm:$0xf]
  %v130 = vld [vmem:[%s1 + $0x4c] sm:$0xf]
  %v131 = vld [vmem:[%s1 + $0x50] sm:$0xf]
  %v132 = vld [vmem:[%s1 + $0x54] sm:$0xf]
  %v133 = vld [vmem:[%s1 + $0x58] sm:$0xf]
  %v134 = vld [vmem:[%s1 + $0x5c] sm:$0xf]
  %v135 = vld [vmem:[%s1 + $0x60] sm:$0xf]
  %v136 = vld [vmem:[%s1 + $0x64] sm:$0xf]
  %v137 = vld [vmem:[%s1 + $0x68] sm:$0xf]
  %v138 = vld [vmem:[%s1 + $0x6c] sm:$0xf]
  %v139 = vld [vmem:[%s1 + $0x70] sm:$0xf]
  %v140 = vld [vmem:[%s1 + $0x74] sm:$0xf]
  %v141 = vld [vmem:[%s1 + $0x78] sm:$0xf]
  %v142 = vld [vmem:[%s1 + $0x7c] sm:$0xf]
  %v143 = vld [vmem:[%s1 + $0x80] sm:$0xf]
  %v144 = vld [vmem:[%s1 + $0x84] sm:$0xf]
  %v145 = vld [vmem:[%s1 + $0x88] sm:$0xf]
  %v146 = vld [vmem:[%s1 + $0x8c] sm:$0xf]
  %v147 = vld [vmem:[%s1 + $0x90] sm:$0xf]
  %v148 = vld [vmem:[%s1 + $0x94] sm:$0xf]
  %v149 = vld [vmem:[%s1 + $0x98] sm:$0xf]
  %v150 = vld [vmem:[%s1 + $0x9c] sm:$0xf]
  %v151 = vld [vmem:[%s1 + $0xa0] sm:$0xf]
  %v152 = vld [vmem:[%s1 + $0xa4] sm:$0xf]
  %v153 = vld [vmem:[%s1 + $0xa8] sm:$0xf]
  %v154 = vld [vmem:[%s1 + $0xac] sm:$0xf]
  %v155 = vld [vmem:[%s1 + $0xb0] sm:$0xf]
  %v156 = vld [vmem:[%s1 + $0xb4] sm:$0xf]
  %v157 = vld [vmem:[%s1 + $0xb8] sm:$0xf]
  %v158 = vld [vmem:[%s1 + $0xbc] sm:$0xf]
  %v159 = vld [vmem:[%s1 + $0xc0] sm:$0xf]
  %v160 = vld [vmem:[%s1 + $0xc4] sm:$0xf]
  %v161 = vld [vmem:[%s1 + $0xc8] sm:$0xf]
  %v162 = vld [vmem:[%s1 + $0xcc] sm:$0xf]
  %v163 = vld [vmem:[%s1 + $0xd0] sm:$0xf]
  %v164 = vld [vmem:[%s1 + $0xd4] sm:$0xf]
  %v165 = vld [vmem:[%s1 + $0xd8] sm:$0xf]
  %v166 = vld [vmem:[%s1 + $0xdc] sm:$0xf]
  %v167 = vld [vmem:[%s1 + $0xe0] sm:$0xf]
  %v168 = vld [vmem:[%s1 + $0xe4] sm:$0xf]
  %v169 = vld [vmem:[%s1 + $0xe8] sm:$0xf]
  %v170 = vld [vmem:[%s1 + $0xec] sm:$0xf]
  %v171 = vld [vmem:[%s1 + $0xf0] sm:$0xf]
  %v172 = vld [vmem:[%s1 + $0xf4] sm:$0xf]
  %v173 = vld [vmem:[%s1 + $0xf8] sm:$0xf]
  %v174 = vld [vmem:[%s1 + $0xfc] sm:$0xf]
  %v175 = vld [vmem:[%s2] sm:$0x1]
  %v177 = vlaneseq
  %v178 = vshrl.u32 %v177, 7
  %v179 = vsub.s32 0, %v178
  %v180 = vrot.slane %v175, %v179
  %v246 = vunpack.c.l.b16 %v111
  %v247 = vunpack.c.l.b16 %v112
  %v248 = vunpack.c.l.b16 %v113
  %v249 = vunpack.c.l.b16 %v114
  %v250 = vunpack.c.l.b16 %v115
  %v251 = vunpack.c.l.b16 %v116
  %v252 = vunpack.c.l.b16 %v117
  %v253 = vunpack.c.l.b16 %v118
  %v254 = vunpack.c.l.b16 %v119
  %v255 = vunpack.c.l.b16 %v120
  %v256 = vunpack.c.l.b16 %v121
  %v257 = vunpack.c.l.b16 %v122
  %v258 = vunpack.c.l.b16 %v123
  %v259 = vunpack.c.l.b16 %v124
  %v260 = vunpack.c.l.b16 %v125
  %v261 = vunpack.c.l.b16 %v126
  %v262 = vunpack.c.l.b16 %v127
  %v263 = vunpack.c.l.b16 %v128
  %v264 = vunpack.c.l.b16 %v129
  %v265 = vunpack.c.l.b16 %v130
  %v266 = vunpack.c.l.b16 %v131
  %v267 = vunpack.c.l.b16 %v132
  %v268 = vunpack.c.l.b16 %v133
  %v269 = vunpack.c.l.b16 %v134
  %v270 = vunpack.c.l.b16 %v135
  %v271 = vunpack.c.l.b16 %v136
  %v272 = vunpack.c.l.b16 %v137
  %v273 = vunpack.c.l.b16 %v138
  %v274 = vunpack.c.l.b16 %v139
  %v275 = vunpack.c.l.b16 %v140
  %v276 = vunpack.c.l.b16 %v141
  %v277 = vunpack.c.l.b16 %v142
  %v278 = vunpack.c.l.b16 %v143
  %v279 = vunpack.c.l.b16 %v144
  %v280 = vunpack.c.l.b16 %v145
  %v281 = vunpack.c.l.b16 %v146
  %v282 = vunpack.c.l.b16 %v147
  %v283 = vunpack.c.l.b16 %v148
  %v284 = vunpack.c.l.b16 %v149
  %v285 = vunpack.c.l.b16 %v150
  %v286 = vunpack.c.l.b16 %v151
  %v287 = vunpack.c.l.b16 %v152
  %v288 = vunpack.c.l.b16 %v153
  %v289 = vunpack.c.l.b16 %v154
  %v290 = vunpack.c.l.b16 %v155
  %v291 = vunpack.c.l.b16 %v156
  %v292 = vunpack.c.l.b16 %v157
  %v293 = vunpack.c.l.b16 %v158
  %v294 = vunpack.c.l.b16 %v159
  %v295 = vunpack.c.l.b16 %v160
  %v296 = vunpack.c.l.b16 %v161
  %v297 = vunpack.c.l.b16 %v162
  %v298 = vunpack.c.l.b16 %v163
  %v299 = vunpack.c.l.b16 %v164
  %v300 = vunpack.c.l.b16 %v165
  %v301 = vunpack.c.l.b16 %v166
  %v302 = vunpack.c.l.b16 %v167
  %v303 = vunpack.c.l.b16 %v168
  %v304 = vunpack.c.l.b16 %v169
  %v305 = vunpack.c.l.b16 %v170
  %v306 = vunpack.c.l.b16 %v171
  %v307 = vunpack.c.l.b16 %v172
  %v308 = vunpack.c.l.b16 %v173
  %v309 = vunpack.c.l.b16 %v174
  %v310 = vpack.c.b16 %v247, %v246
  %v311 = vpack.c.b16 %v249, %v248
  %v312 = vpack.c.b16 %v251, %v250
  %v313 = vpack.c.b16 %v253, %v252
  %v314 = vpack.c.b16 %v255, %v254
  %v315 = vpack.c.b16 %v257, %v256
  %v316 = vpack.c.b16 %v259, %v258
  %v317 = vpack.c.b16 %v261, %v260
  %v318 = vpack.c.b16 %v263, %v262
  %v319 = vpack.c.b16 %v265, %v264
  %v320 = vpack.c.b16 %v267, %v266
  %v321 = vpack.c.b16 %v269, %v268
  %v322 = vpack.c.b16 %v271, %v270
  %v323 = vpack.c.b16 %v273, %v272
  %v324 = vpack.c.b16 %v275, %v274
  %v325 = vpack.c.b16 %v277, %v276
  %v326 = vpack.c.b16 %v279, %v278
  %v327 = vpack.c.b16 %v281, %v280
  %v328 = vpack.c.b16 %v283, %v282
  %v329 = vpack.c.b16 %v285, %v284
  %v330 = vpack.c.b16 %v287, %v286
  %v331 = vpack.c.b16 %v289, %v288
  %v332 = vpack.c.b16 %v291, %v290
  %v333 = vpack.c.b16 %v293, %v292
  %v334 = vpack.c.b16 %v295, %v294
  %v335 = vpack.c.b16 %v297, %v296
  %v336 = vpack.c.b16 %v299, %v298
  %v337 = vpack.c.b16 %v301, %v300
  %v338 = vpack.c.b16 %v303, %v302
  %v339 = vpack.c.b16 %v305, %v304
  %v340 = vpack.c.b16 %v307, %v306
  %v341 = vpack.c.b16 %v309, %v308
  %374 = vmatprep.subr.bf16.mxu0 0
  %375 = vmatpush1.bf16.msra.mxu0 %v310
  %376 = vmatprep.subr.bf16.mxu0 0
  %377 = vmatpush1.bf16.msra.mxu0 %v311
  %378 = vmatprep.subr.bf16.mxu0 0
  %379 = vmatpush1.bf16.msra.mxu0 %v312
  %380 = vmatprep.subr.bf16.mxu0 0
  %381 = vmatpush1.bf16.msra.mxu0 %v313
  %382 = vmatprep.subr.bf16.mxu0 0
  %383 = vmatpush1.bf16.msra.mxu0 %v314
  %384 = vmatprep.subr.bf16.mxu0 0
  %385 = vmatpush1.bf16.msra.mxu0 %v315
  %386 = vmatprep.subr.bf16.mxu0 0
  %387 = vmatpush1.bf16.msra.mxu0 %v316
  %388 = vmatprep.subr.bf16.mxu0 0
  %389 = vmatpush1.bf16.msra.mxu0 %v317
  %390 = vmatprep.subr.bf16.mxu0 0
  %391 = vmatpush1.bf16.msra.mxu0 %v318
  %392 = vmatprep.subr.bf16.mxu0 0
  %393 = vmatpush1.bf16.msra.mxu0 %v319
  %394 = vmatprep.subr.bf16.mxu0 0
  %395 = vmatpush1.bf16.msra.mxu0 %v320
  %396 = vmatprep.subr.bf16.mxu0 0
  %397 = vmatpush1.bf16.msra.mxu0 %v321
  %398 = vmatprep.subr.bf16.mxu0 0
  %399 = vmatpush1.bf16.msra.mxu0 %v322
  %400 = vmatprep.subr.bf16.mxu0 0
  %401 = vmatpush1.bf16.msra.mxu0 %v323
  %402 = vmatprep.subr.bf16.mxu0 0
  %403 = vmatpush1.bf16.msra.mxu0 %v324
  %404 = vmatprep.subr.bf16.mxu0 0
  %405 = vmatpush1.bf16.msra.mxu0 %v325
  %406 = vmatprep.mubr.bf16.mxu0 %v80
  %407 = vmatmul.mubr.bf16.gmra.mrb[0].mxu0 %v79
  %v408 = vpop.f32.mrb[0].mxu0
  %v409 = vadd.f32 %v180, %v408
  %v410 = vpop.f32.mrb[0].mxu0
  %v411 = vpop.f32.mrb[0].mxu0
  %v412 = vadd.f32 %v180, %v411
  %v413 = vpop.f32.mrb[0].mxu0
  %414 = vmatprep.mubr.bf16.mxu0 %v84
  %415 = vmatmul.mubr.bf16.gmra.mrb[0].mxu0 %v83
  %v416 = vpop.f32.mrb[0].mxu0
  %v417 = vadd.f32 %v180, %v416
  %v418 = vpop.f32.mrb[0].mxu0
  %v419 = vpop.f32.mrb[0].mxu0
  %v420 = vadd.f32 %v180, %v419
  %v421 = vpop.f32.mrb[0].mxu0
  %422 = vmatprep.mubr.bf16.mxu0 %v88
  %423 = vmatmul.mubr.bf16.gmra.mrb[0].mxu0 %v87
  %v424 = vpop.f32.mrb[0].mxu0
  %v425 = vadd.f32 %v180, %v424
  %v426 = vpop.f32.mrb[0].mxu0
  %v427 = vpop.f32.mrb[0].mxu0
  %v428 = vadd.f32 %v180, %v427
  %v429 = vpop.f32.mrb[0].mxu0
  %430 = vmatprep.mubr.bf16.mxu0 %v92
  %431 = vmatmul.mubr.bf16.gmra.mrb[0].mxu0 %v91
  %v432 = vpop.f32.mrb[0].mxu0
  %v433 = vadd.f32 %v180, %v432
  %v434 = vpop.f32.mrb[0].mxu0
  %v435 = vpop.f32.mrb[0].mxu0
  %v436 = vadd.f32 %v180, %v435
  %v437 = vpop.f32.mrb[0].mxu0
  %438 = vmatprep.mubr.bf16.mxu0 %v96
  %439 = vmatmul.mubr.bf16.gmra.mrb[0].mxu0 %v95
  %v440 = vpop.f32.mrb[0].mxu0
  %v441 = vadd.f32 %v180, %v440
  %v442 = vpop.f32.mrb[0].mxu0
  %v443 = vpop.f32.mrb[0].mxu0
  %v444 = vadd.f32 %v180, %v443
  %v445 = vpop.f32.mrb[0].mxu0
  %446 = vmatprep.mubr.bf16.mxu0 %v100
  %447 = vmatmul.mubr.bf16.gmra.mrb[0].mxu0 %v99
  %v448 = vpop.f32.mrb[0].mxu0
  %v449 = vadd.f32 %v180, %v448
  %v450 = vpop.f32.mrb[0].mxu0
  %v451 = vpop.f32.mrb[0].mxu0
  %v452 = vadd.f32 %v180, %v451
  %v453 = vpop.f32.mrb[0].mxu0
  %454 = vmatprep.mubr.bf16.mxu0 %v104
  %455 = vmatmul.mubr.bf16.gmra.mrb[0].mxu0 %v103
  %v456 = vpop.f32.mrb[0].mxu0
  %v457 = vadd.f32 %v180, %v456
  %v458 = vpop.f32.mrb[0].mxu0
  %v459 = vpop.f32.mrb[0].mxu0
  %v460 = vadd.f32 %v180, %v459
  %v461 = vpop.f32.mrb[0].mxu0
  %462 = vmatprep.mubr.bf16.mxu0 %v108
  %463 = vmatmul.mubr.bf16.gmra.mrb[0].mxu0 %v107
  %v464 = vpop.f32.mrb[0].mxu0
  %v465 = vadd.f32 %v180, %v464
  %v466 = vpop.f32.mrb[0].mxu0
  %v467 = vpop.f32.mrb[0].mxu0
  %v468 = vadd.f32 %v180, %v467
  %v469 = vpop.f32.mrb[0].mxu0
  %470 = vdwg.mxu0
  %471 = vmatprep.subr.bf16.mxu0 0
  %472 = vmatpush1.bf16.msra.mxu0 %v326
  %473 = vmatprep.subr.bf16.mxu0 0
  %474 = vmatpush1.bf16.msra.mxu0 %v327
  %475 = vmatprep.subr.bf16.mxu0 0
  %476 = vmatpush1.bf16.msra.mxu0 %v328
  %477 = vmatprep.subr.bf16.mxu0 0
  %478 = vmatpush1.bf16.msra.mxu0 %v329
  %479 = vmatprep.subr.bf16.mxu0 0
  %480 = vmatpush1.bf16.msra.mxu0 %v330
  %481 = vmatprep.subr.bf16.mxu0 0
  %482 = vmatpush1.bf16.msra.mxu0 %v331
  %483 = vmatprep.subr.bf16.mxu0 0
  %484 = vmatpush1.bf16.msra.mxu0 %v332
  %485 = vmatprep.subr.bf16.mxu0 0
  %486 = vmatpush1.bf16.msra.mxu0 %v333
  %487 = vmatprep.subr.bf16.mxu0 0
  %488 = vmatpush1.bf16.msra.mxu0 %v334
  %489 = vmatprep.subr.bf16.mxu0 0
  %490 = vmatpush1.bf16.msra.mxu0 %v335
  %491 = vmatprep.subr.bf16.mxu0 0
  %492 = vmatpush1.bf16.msra.mxu0 %v336
  %493 = vmatprep.subr.bf16.mxu0 0
  %494 = vmatpush1.bf16.msra.mxu0 %v337
  %495 = vmatprep.subr.bf16.mxu0 0
  %496 = vmatpush1.bf16.msra.mxu0 %v338
  %497 = vmatprep.subr.bf16.mxu0 0
  %498 = vmatpush1.bf16.msra.mxu0 %v339
  %499 = vmatprep.subr.bf16.mxu0 0
  %500 = vmatpush1.bf16.msra.mxu0 %v340
  %501 = vmatprep.subr.bf16.mxu0 0
  %502 = vmatpush1.bf16.msra.mxu0 %v341
  %503 = vmatprep.mubr.bf16.mxu0 %v82
  %504 = vmatmul.mubr.bf16.gmra.mrb[0].mxu0 %v81
  %v505 = vpop.f32.mrb[0].mxu0
  %v506 = vadd.f32 %v409, %v505
  %v507 = vpop.f32.mrb[0].mxu0
  %v508 = vpop.f32.mrb[0].mxu0
  %v509 = vadd.f32 %v412, %v508
  %v510 = vpop.f32.mrb[0].mxu0
  %511 = vmatprep.mubr.bf16.mxu0 %v86
  %512 = vmatmul.mubr.bf16.gmra.mrb[0].mxu0 %v85
  %v513 = vpop.f32.mrb[0].mxu0
  %v514 = vadd.f32 %v417, %v513
  %v515 = vpop.f32.mrb[0].mxu0
  %v516 = vpop.f32.mrb[0].mxu0
  %v517 = vadd.f32 %v420, %v516
  %v518 = vpop.f32.mrb[0].mxu0
  %519 = vmatprep.mubr.bf16.mxu0 %v90
  %520 = vmatmul.mubr.bf16.gmra.mrb[0].mxu0 %v89
  %v521 = vpop.f32.mrb[0].mxu0
  %v522 = vadd.f32 %v425, %v521
  %v523 = vpop.f32.mrb[0].mxu0
  %v524 = vpop.f32.mrb[0].mxu0
  %v525 = vadd.f32 %v428, %v524
  %v526 = vpop.f32.mrb[0].mxu0
  %527 = vmatprep.mubr.bf16.mxu0 %v94
  %528 = vmatmul.mubr.bf16.gmra.mrb[0].mxu0 %v93
  %v529 = vpop.f32.mrb[0].mxu0
  %v530 = vadd.f32 %v433, %v529
  %v531 = vpop.f32.mrb[0].mxu0
  %v532 = vpop.f32.mrb[0].mxu0
  %v533 = vadd.f32 %v436, %v532
  %v534 = vpop.f32.mrb[0].mxu0
  %535 = vmatprep.mubr.bf16.mxu0 %v98
  %536 = vmatmul.mubr.bf16.gmra.mrb[0].mxu0 %v97
  %v537 = vpop.f32.mrb[0].mxu0
  %v538 = vadd.f32 %v441, %v537
  %v539 = vpop.f32.mrb[0].mxu0
  %v540 = vpop.f32.mrb[0].mxu0
  %v541 = vadd.f32 %v444, %v540
  %v542 = vpop.f32.mrb[0].mxu0
  %543 = vmatprep.mubr.bf16.mxu0 %v102
  %544 = vmatmul.mubr.bf16.gmra.mrb[0].mxu0 %v101
  %v545 = vpop.f32.mrb[0].mxu0
  %v546 = vadd.f32 %v449, %v545
  %v547 = vpop.f32.mrb[0].mxu0
  %v548 = vpop.f32.mrb[0].mxu0
  %v549 = vadd.f32 %v452, %v548
  %v550 = vpop.f32.mrb[0].mxu0
  %551 = vmatprep.mubr.bf16.mxu0 %v106
  %552 = vmatmul.mubr.bf16.gmra.mrb[0].mxu0 %v105
  %v553 = vpop.f32.mrb[0].mxu0
  %v554 = vadd.f32 %v457, %v553
  %v555 = vpop.f32.mrb[0].mxu0
  %v556 = vpop.f32.mrb[0].mxu0
  %v557 = vadd.f32 %v460, %v556
  %v558 = vpop.f32.mrb[0].mxu0
  %559 = vmatprep.mubr.bf16.mxu0 %v110
  %560 = vmatmul.mubr.bf16.gmra.mrb[0].mxu0 %v109
  %v561 = vpop.f32.mrb[0].mxu0
  %v562 = vadd.f32 %v465, %v561
  %v563 = vpop.f32.mrb[0].mxu0
  %v564 = vpop.f32.mrb[0].mxu0
  %v565 = vadd.f32 %v468, %v564
  %v566 = vpop.f32.mrb[0].mxu0
  %567 = vdwg.mxu0
  %568 = vst [vmem:[%s3] sm:$0xff] %v506
  %569 = vst [vmem:[%s3 + $0x8] sm:$0xff] %v509
  %570 = vst [vmem:[%s3 + $0x10] sm:$0xff] %v514
  %571 = vst [vmem:[%s3 + $0x18] sm:$0xff] %v517
  %572 = vst [vmem:[%s3 + $0x20] sm:$0xff] %v522
  %573 = vst [vmem:[%s3 + $0x28] sm:$0xff] %v525
  %574 = vst [vmem:[%s3 + $0x30] sm:$0xff] %v530
  %575 = vst [vmem:[%s3 + $0x38] sm:$0xff] %v533
  %576 = vst [vmem:[%s3 + $0x40] sm:$0xff] %v538
  %577 = vst [vmem:[%s3 + $0x48] sm:$0xff] %v541
  %578 = vst [vmem:[%s3 + $0x50] sm:$0xff] %v546
  %579 = vst [vmem:[%s3 + $0x58] sm:$0xff] %v549
  %580 = vst [vmem:[%s3 + $0x60] sm:$0xff] %v554
  %581 = vst [vmem:[%s3 + $0x68] sm:$0xff] %v557
  %582 = vst [vmem:[%s3 + $0x70] sm:$0xff] %v562
  %583 = vst [vmem:[%s3 + $0x78] sm:$0xff] %v565
  // Predicated region
  $region14: #{_lambda_.1} parent=0 // pred_check
    _
  $region15: #{_lambda_.1} parent=0 // pred_check_branch
    %585 = sbr.rel (0) target = $region17
  $region16: #{_lambda_.1} parent=0 // pred_region
    _
  $region17: #{_lambda_.1} parent=0 // pred_fallthru
    _
  // Predicated region
  $region18: #{_lambda_.1} parent=0 // pred_check
    _
  $region19: #{_lambda_.1} parent=0 // pred_check_branch
    %587 = sbr.rel (0) target = $region21
  $region20: #{_lambda_.1} parent=0 // pred_region
    _
  $region21: #{_lambda_.1} parent=0 // pred_fallthru
    _

</llo_original>
